<compile_context>
chip_gen: v7x
topology: tpu7x:2x2x1
jax: 0.10.0
libtpu: 0.0.40
codegen_flags: <defaults>
</compile_context>

<pallas_src>
import math

import jax
import jax.numpy as jnp
from jax import lax
from jax.experimental import pallas as pl
from jax.experimental.pallas import tpu as pltpu


def _round_up(x, m):
    return (x + m - 1) // m * m


def _choose_tile_b(b_pad, tile_cap):
    """Largest multiple of 128 that divides b_pad and is <= tile_cap.

    Prefers >= 2 grid steps whenever b_pad >= 256 (v7x 2-TC sharding).
    b_pad must be a multiple of 128.
    """
    m = b_pad // 128
    cap = max(tile_cap // 128, 1)
    best = 1
    for k in range(1, m + 1):
        if m % k != 0 or k > cap:
            continue
        if m >= 2 and k == m:          # keep at least 2 grid steps
            continue
        best = k
    return 128 * best


# ----------------------------- Pallas kernel --------------------------------
def qnetwork_kernel(obs_ref, act_ref, w1o_ref, w1a_ref, b1_ref,
                    w2_ref, b2_ref, w3_ref, b3_ref, o_ref):
    # obs_ref: (TB, obs_dim)   act_ref: (TB, act_dim)      (matmul dtype)
    # w1o_ref: (obs_dim, Hp)   w1a_ref: (act_dim, Hp)      b1_ref: (1, Hp) f32
    # w2_ref : (Hp, Hp)        b2_ref : (1, Hp) f32
    # w3_ref : (1, Hp)         b3_ref : (1,) f32 scalar in SMEM
    # o_ref  : (1, TB)         lane-dense output row
    cdt = w2_ref.dtype  # MXU operand dtype (f32 or bf16)

    # fc1 (split) == fc1(concat([obs, act], axis=1)); f32 accumulation on MXU.
    h1 = jnp.dot(obs_ref[...], w1o_ref[...], preferred_element_type=jnp.float32)
    h1 = h1 + jnp.dot(act_ref[...], w1a_ref[...],
                      preferred_element_type=jnp.float32)
    h1 = jnp.maximum(h1 + b1_ref[...], 0.0)              # bias + ReLU in f32

    # fc2
    h2 = jnp.dot(h1.astype(cdt), w2_ref[...],
                 preferred_element_type=jnp.float32)
    h2 = jnp.maximum(h2 + b2_ref[...], 0.0)

    # fc3 (H -> 1) as an M=1 MXU matmul: result is (1, TB), already lane-dense,
    # so no XLU sublane->lane relayout in the epilogue.
    q = lax.dot_general(w3_ref[...], h2.astype(cdt),
                        dimension_numbers=(((1,), (1,)), ((), ())),
                        preferred_element_type=jnp.float32)   # (1, TB)
    o_ref[...] = (q + b3_ref[0]).astype(o_ref.dtype)


# --------------------------- one-time weight prep ----------------------------
def prepare_params(params, obs_dim, *, matmul_dtype=jnp.float32):
    """Hoisted weight layout: run ONCE (per optimizer step), not per forward.

    Splits W1 at obs_dim, zero-pads H to a multiple of 128 (zeros are inert
    through bias+ReLU and the later layers), casts MXU operands to
    matmul_dtype, keeps biases in f32.
    """
    w1, b1, w2, b2, w3, b3 = params
    H = w2.shape[0]
    Hp = _round_up(H, 128)
    ph = Hp - H

    w1p = jnp.pad(w1, ((0, 0), (0, ph)))
    w2p = jnp.pad(w2, ((0, ph), (0, ph)))
    w3p = jnp.pad(w3, ((0, ph), (0, 0)))

    w1o = w1p[:obs_dim].astype(matmul_dtype)                  # (obs_dim, Hp)
    w1a = w1p[obs_dim:].astype(matmul_dtype)                  # (act_dim, Hp)
    w2c = w2p.astype(matmul_dtype)                            # (Hp, Hp)
    w3r = w3p.reshape(1, Hp).astype(matmul_dtype)             # (1, Hp)
    b1p = jnp.pad(b1.reshape(1, H), ((0, 0), (0, ph))).astype(jnp.float32)
    b2p = jnp.pad(b2.reshape(1, H), ((0, 0), (0, ph))).astype(jnp.float32)
    b3s = b3.reshape(1).astype(jnp.float32)                   # scalar -> SMEM
    return (w1o, w1a, b1p, w2c, b2p, w3r, b3s)


# ------------------------------- wrapper -------------------------------------
def qnetwork_forward(inputs, a, prepared, *, tile_b=4096):
    """Pallas-backed forward: fc3(relu(fc2(relu(fc1(cat[inputs, a])))))."""
    w1o, w1a, b1, w2, b2, w3r, b3s = prepared
    B, obs_dim = inputs.shape
    act_dim = a.shape[1]
    Hp = w2.shape[0]
    cdt = w2.dtype

    # Stream the batch tiles at MXU operand precision (halves per-step HBM DMA
    # when cdt == bf16).
    # TODO(synk): keep activations bf16 upstream to avoid this per-call cast.
    if inputs.dtype != cdt:
        inputs = inputs.astype(cdt)
    if a.dtype != cdt:
        a = a.astype(cdt)

    # Batch tiling: pad B to a multiple of 128 only if needed (no pad when B is
    # already 128-aligned), then pick a 128-multiple tile that divides B_pad.
    B_pad = _round_up(B, 128)
    TILE_B = _choose_tile_b(B_pad, tile_b)
    if B_pad != B:
        pad = B_pad - B
        inputs = jnp.pad(inputs, ((0, pad), (0, 0)))
        a = jnp.pad(a, ((0, pad), (0, 0)))
    grid = (B_pad // TILE_B,)

    # Advisory cost estimate so XLA can schedule producers around the kernel.
    itemsz = lambda arr: int(arr.size) * arr.dtype.itemsize
    flops = 2 * B_pad * (obs_dim * Hp + act_dim * Hp + Hp * Hp + Hp)
    bytes_accessed = (itemsz(inputs) + itemsz(a) + itemsz(w1o) + itemsz(w1a)
                      + itemsz(b1) + itemsz(w2) + itemsz(b2) + itemsz(w3r)
                      + itemsz(b3s) + B_pad * 4)
    cost = pl.CostEstimate(flops=flops, transcendentals=0,
                           bytes_accessed=bytes_accessed)

    out = pl.pallas_call(
        qnetwork_kernel,
        out_shape=jax.ShapeDtypeStruct((1, B_pad), jnp.float32),
        grid_spec=pltpu.PrefetchScalarGridSpec(
            num_scalar_prefetch=0,
            grid=grid,
            in_specs=[
                pl.BlockSpec((TILE_B, obs_dim), lambda i: (i, 0)),   # obs tile
                pl.BlockSpec((TILE_B, act_dim), lambda i: (i, 0)),   # act tile
                pl.BlockSpec((obs_dim, Hp), lambda i: (0, 0)),       # W1[:obs]  (resident)
                pl.BlockSpec((act_dim, Hp), lambda i: (0, 0)),       # W1[obs:]  (resident)
                pl.BlockSpec((1, Hp), lambda i: (0, 0)),             # b1        (resident)
                pl.BlockSpec((Hp, Hp), lambda i: (0, 0)),            # W2        (resident)
                pl.BlockSpec((1, Hp), lambda i: (0, 0)),             # b2        (resident)
                pl.BlockSpec((1, Hp), lambda i: (0, 0)),             # w3 row    (resident)
                pl.BlockSpec(memory_space=pltpu.MemorySpace.SMEM),   # b3 scalar
            ],
            out_specs=pl.BlockSpec((1, TILE_B), lambda i: (0, i)),   # lane-dense output
        ),
        compiler_params=pltpu.CompilerParams(
            dimension_semantics=("parallel",),        # megacore / v7x 2-TC sharding
            vmem_limit_bytes=32 * 1024 * 1024,        # safe ceiling on v5e/v6e/v7x
        ),
        cost_estimate=cost,
    )(inputs, a, w1o, w1a, b1, w2, b2, w3r, b3s)

    return out[0, :B].reshape(B, 1)


# --------------------------- parameter construction -------------------------
def init_params(key, obs_dim, act_dim, hidden_size):
    """Deterministic init mimicking nn.Linear's U(-1/sqrt(fan_in), 1/sqrt(fan_in)).

    Weights are stored (in_features, out_features), i.e. transposed w.r.t.
    PyTorch's (out, in), so forward computes y = x @ W + b.
    """
    d_in = obs_dim + act_dim
    k1, k2, k3, k4, k5, k6 = jax.random.split(key, 6)

    def unif(k, shape, fan_in):
        bound = 1.0 / math.sqrt(fan_in)
        return jax.random.uniform(k, shape, jnp.float32, -bound, bound)

    w1 = unif(k1, (d_in, hidden_size), d_in)
    b1 = unif(k2, (hidden_size,), d_in)
    w2 = unif(k3, (hidden_size, hidden_size), hidden_size)
    b2 = unif(k4, (hidden_size,), hidden_size)
    w3 = unif(k5, (hidden_size, 1), hidden_size)
    b3 = unif(k6, (1,), hidden_size)
    return (w1, b1, w2, b2, w3, b3)


def _reference(inputs, a, params):
    w1, b1, w2, b2, w3, b3 = params
    x = jnp.concatenate([inputs, a], axis=1)
    h1 = jnp.maximum(x @ w1 + b1, 0.0)
    h2 = jnp.maximum(h1 @ w2 + b2, 0.0)
    return h2 @ w3 + b3


# --------------------------------- main --------------------------------------
if __name__ == "__main__":
    key = jax.random.PRNGKey(0)
    obs_dim, act_dim, hidden = 16, 4, 32
    batch = 8

    k_obs, k_act, k_par, k_obs2, k_act2 = jax.random.split(key, 5)
    inputs = jax.random.normal(k_obs, (batch, obs_dim), jnp.float32)
    a = jax.random.normal(k_act, (batch, act_dim), jnp.float32)
    params = init_params(k_par, obs_dim, act_dim, hidden)

    ref = _reference(inputs, a, params)

    # f32 MXU-operand path: tight check.
    prep_f32 = jax.tree_util.tree_map(jax.block_until_ready,
                                      prepare_params(params, obs_dim,
                                                     matmul_dtype=jnp.float32))
    q_f32 = jax.block_until_ready(qnetwork_forward(inputs, a, prep_f32))
    assert q_f32.shape == (batch, 1)
    assert jnp.allclose(q_f32, ref, atol=1e-4, rtol=1e-4)

    # bf16 MXU-operand path (fast path on v5e/v6e/v7x): loose check vs f32 ref.
    prep_bf16 = prepare_params(params, obs_dim, matmul_dtype=jnp.bfloat16)
    q_bf16 = jax.block_until_ready(qnetwork_forward(inputs, a, prep_bf16))
    assert q_bf16.shape == (batch, 1)
    assert jnp.allclose(q_bf16, ref, atol=5e-2, rtol=5e-2)

    # Multi-tile path (B = 256 -> grid of 2, exercising the batch pipeline /
    # v7x two-core sharding) — still small and fast.
    B2 = 256
    inputs2 = jax.random.normal(k_obs2, (B2, obs_dim), jnp.float32)
    a2 = jax.random.normal(k_act2, (B2, act_dim), jnp.float32)
    ref2 = _reference(inputs2, a2, params)
    q2 = jax.block_until_ready(qnetwork_forward(inputs2, a2, prep_f32))
    assert q2.shape == (B2, 1)
    assert jnp.allclose(q2, ref2, atol=1e-4, rtol=1e-4)

    print("KERNEL_OK")
</pallas_src>

<mosaic_0001>
module attributes {stable_mosaic.version = 11 : i64} {
  func.func @qnetwork_kernel(%arg0: i32, %arg1: memref<128x16xf32, #tpu.memory_space<vmem>>, %arg2: memref<128x4xf32, #tpu.memory_space<vmem>>, %arg3: memref<16x128xf32, #tpu.memory_space<vmem>>, %arg4: memref<4x128xf32, #tpu.memory_space<vmem>>, %arg5: memref<1x128xf32, #tpu.memory_space<vmem>>, %arg6: memref<128x128xf32, #tpu.memory_space<vmem>>, %arg7: memref<1x128xf32, #tpu.memory_space<vmem>>, %arg8: memref<1x128xf32, #tpu.memory_space<vmem>>, %arg9: memref<1xf32, #tpu.memory_space<smem>>, %arg10: memref<1x128xf32, #tpu.memory_space<vmem>>) attributes {dimension_semantics = [#tpu.dimension_semantics<parallel>], iteration_bounds = array<i64: 1>, scalar_prefetch = 0 : i64, scratch_operands = 0 : i64, tpu.core_type = #tpu.core_type<tc>, window_params = [{transform_indices = @transform_0, window_bounds = array<i64: 128, 16>}, {transform_indices = @transform_1, window_bounds = array<i64: 128, 4>}, {pipeline_mode = #tpu.pipeline_mode<synchronous>, transform_indices = @transform_2, window_bounds = array<i64: 16, 128>}, {pipeline_mode = #tpu.pipeline_mode<synchronous>, transform_indices = @transform_3, window_bounds = array<i64: 4, 128>}, {pipeline_mode = #tpu.pipeline_mode<synchronous>, transform_indices = @transform_4, window_bounds = array<i64: 1, 128>}, {pipeline_mode = #tpu.pipeline_mode<synchronous>, transform_indices = @transform_5, window_bounds = array<i64: 128, 128>}, {pipeline_mode = #tpu.pipeline_mode<synchronous>, transform_indices = @transform_6, window_bounds = array<i64: 1, 128>}, {pipeline_mode = #tpu.pipeline_mode<synchronous>, transform_indices = @transform_7, window_bounds = array<i64: 1, 128>}, {transform_indices = @transform_8, window_bounds = array<i64: 1>}, {transform_indices = @transform_9, window_bounds = array<i64: 1, 128>}]} {
    %c0 = arith.constant 0 : index
    %c0_0 = arith.constant 0 : index
    %0 = vector.load %arg1[%c0, %c0_0] : memref<128x16xf32, #tpu.memory_space<vmem>>, vector<128x16xf32>
    %c0_1 = arith.constant 0 : index
    %c0_2 = arith.constant 0 : index
    %1 = vector.load %arg3[%c0_1, %c0_2] : memref<16x128xf32, #tpu.memory_space<vmem>>, vector<16x128xf32>
    %cst = arith.constant dense<0.000000e+00> : vector<128x128xf32>
    %2 = tpu.matmul %0, %1, %cst {dimension_numbers = #tpu.dot_dimension_numbers<[1], [0], [0], [1], [0, 0, 1, 1], [], []>} : vector<128x16xf32>, vector<16x128xf32>, vector<128x128xf32> -> vector<128x128xf32>
    %c0_3 = arith.constant 0 : index
    %c0_4 = arith.constant 0 : index
    %3 = vector.load %arg2[%c0_3, %c0_4] : memref<128x4xf32, #tpu.memory_space<vmem>>, vector<128x4xf32>
    %c0_5 = arith.constant 0 : index
    %c0_6 = arith.constant 0 : index
    %4 = vector.load %arg4[%c0_5, %c0_6] : memref<4x128xf32, #tpu.memory_space<vmem>>, vector<4x128xf32>
    %cst_7 = arith.constant dense<0.000000e+00> : vector<128x128xf32>
    %5 = tpu.matmul %3, %4, %cst_7 {dimension_numbers = #tpu.dot_dimension_numbers<[1], [0], [0], [1], [0, 0, 1, 1], [], []>} : vector<128x4xf32>, vector<4x128xf32>, vector<128x128xf32> -> vector<128x128xf32>
    %6 = arith.addf %2, %5 : vector<128x128xf32>
    %c0_8 = arith.constant 0 : index
    %c0_9 = arith.constant 0 : index
    %7 = vector.load %arg5[%c0_8, %c0_9] : memref<1x128xf32, #tpu.memory_space<vmem>>, vector<1x128xf32>
    %8 = vector.broadcast %7 : vector<1x128xf32> to vector<128x128xf32>
    %9 = arith.addf %6, %8 : vector<128x128xf32>
    %cst_10 = arith.constant 0.000000e+00 : f32
    %10 = vector.broadcast %cst_10 : f32 to vector<128x128xf32>
    %11 = arith.maximumf %9, %10 : vector<128x128xf32>
    %c0_11 = arith.constant 0 : index
    %c0_12 = arith.constant 0 : index
    %12 = vector.load %arg6[%c0_11, %c0_12] : memref<128x128xf32, #tpu.memory_space<vmem>>, vector<128x128xf32>
    %cst_13 = arith.constant dense<0.000000e+00> : vector<128x128xf32>
    %13 = tpu.matmul %11, %12, %cst_13 {dimension_numbers = #tpu.dot_dimension_numbers<[1], [0], [0], [1], [0, 0, 1, 1], [], []>} : vector<128x128xf32>, vector<128x128xf32>, vector<128x128xf32> -> vector<128x128xf32>
    %c0_14 = arith.constant 0 : index
    %c0_15 = arith.constant 0 : index
    %14 = vector.load %arg7[%c0_14, %c0_15] : memref<1x128xf32, #tpu.memory_space<vmem>>, vector<1x128xf32>
    %15 = vector.broadcast %14 : vector<1x128xf32> to vector<128x128xf32>
    %16 = arith.addf %13, %15 : vector<128x128xf32>
    %cst_16 = arith.constant 0.000000e+00 : f32
    %17 = vector.broadcast %cst_16 : f32 to vector<128x128xf32>
    %18 = arith.maximumf %16, %17 : vector<128x128xf32>
    %c0_17 = arith.constant 0 : index
    %c0_18 = arith.constant 0 : index
    %19 = vector.load %arg8[%c0_17, %c0_18] : memref<1x128xf32, #tpu.memory_space<vmem>>, vector<1x128xf32>
    %cst_19 = arith.constant dense<0.000000e+00> : vector<1x128xf32>
    %20 = tpu.matmul %19, %18, %cst_19 {dimension_numbers = #tpu.dot_dimension_numbers<[1], [1], [0], [0], [0, 0, 1, 0], [], []>} : vector<1x128xf32>, vector<128x128xf32>, vector<1x128xf32> -> vector<1x128xf32>
    %c0_20 = arith.constant 0 : index
    %21 = memref.load %arg9[%c0_20] : memref<1xf32, #tpu.memory_space<smem>>
    %22 = vector.broadcast %21 : f32 to vector<1x128xf32>
    %23 = arith.addf %20, %22 : vector<1x128xf32>
    %c0_21 = arith.constant 0 : index
    %c0_22 = arith.constant 0 : index
    %24 = vector.load %arg10[%c0_21, %c0_22] : memref<1x128xf32, #tpu.memory_space<vmem>>, vector<1x128xf32>
    tpu.vector_store %arg10[%c0_21, %c0_22], %23 {strides = array<i32>} : memref<1x128xf32, #tpu.memory_space<vmem>>, vector<1x128xf32>,
    return
  }
  func.func @transform_0(%arg0: i32) -> (i32, i32) {
    %c0_i32 = arith.constant 0 : i32
    %c0_i32_0 = arith.constant 0 : i32
    return %arg0, %c0_i32 : i32, i32
  }
  func.func @transform_1(%arg0: i32) -> (i32, i32) {
    %c0_i32 = arith.constant 0 : i32
    %c0_i32_0 = arith.constant 0 : i32
    return %arg0, %c0_i32 : i32, i32
  }
  func.func @transform_2(%arg0: i32) -> (i32, i32) {
    %c0_i32 = arith.constant 0 : i32
    %c0_i32_0 = arith.constant 0 : i32
    %c0_i32_1 = arith.constant 0 : i32
    return %c0_i32, %c0_i32_0 : i32, i32
  }
  func.func @transform_3(%arg0: i32) -> (i32, i32) {
    %c0_i32 = arith.constant 0 : i32
    %c0_i32_0 = arith.constant 0 : i32
    %c0_i32_1 = arith.constant 0 : i32
    return %c0_i32, %c0_i32_0 : i32, i32
  }
  func.func @transform_4(%arg0: i32) -> (i32, i32) {
    %c0_i32 = arith.constant 0 : i32
    %c0_i32_0 = arith.constant 0 : i32
    %c0_i32_1 = arith.constant 0 : i32
    return %c0_i32, %c0_i32_0 : i32, i32
  }
  func.func @transform_5(%arg0: i32) -> (i32, i32) {
    %c0_i32 = arith.constant 0 : i32
    %c0_i32_0 = arith.constant 0 : i32
    %c0_i32_1 = arith.constant 0 : i32
    return %c0_i32, %c0_i32_0 : i32, i32
  }
  func.func @transform_6(%arg0: i32) -> (i32, i32) {
    %c0_i32 = arith.constant 0 : i32
    %c0_i32_0 = arith.constant 0 : i32
    %c0_i32_1 = arith.constant 0 : i32
    return %c0_i32, %c0_i32_0 : i32, i32
  }
  func.func @transform_7(%arg0: i32) -> (i32, i32) {
    %c0_i32 = arith.constant 0 : i32
    %c0_i32_0 = arith.constant 0 : i32
    %c0_i32_1 = arith.constant 0 : i32
    return %c0_i32, %c0_i32_0 : i32, i32
  }
  func.func @transform_8(%arg0: i32) -> i32 {
    %c0_i32 = arith.constant 0 : i32
    %c0_i32_0 = arith.constant 0 : i32
    return %c0_i32 : i32
  }
  func.func @transform_9(%arg0: i32) -> (i32, i32) {
    %c0_i32 = arith.constant 0 : i32
    %c0_i32_0 = arith.constant 0 : i32
    return %c0_i32, %arg0 : i32, i32
  }
}

</mosaic_0001>

<llo_original>
// kernel: tpu_custom_call.1
$region0: #{tpu_custom_call.1}
  #allocation0 [shape = 'u32[]', space=smem, size = 0x4, offset = 0x4, fixed_abs, tag = 'smem constant byte address 0x4 - core index']
  #allocation1 [shape = 'u32[144,128]{1,0:T(1,128)}', space=vmem, size = 0x12000, scoped, tag = 'internal scratch']
  #allocation2 [shape = 'f32[1]{0:T(128)S(6)}', space=smem, size = 0x200, scoped, tag = 'scoped memory for tpu_custom_call.1']
  %s0 = inlined_call_operand.vmem [shape: f32[128,16], index: 0, kind: input, shape index: {}]
  %s1 = inlined_call_operand.vmem [shape: f32[128,4], index: 1, kind: input, shape index: {}]
  %s2 = inlined_call_operand.vmem [shape: f32[16,128], index: 2, kind: input, shape index: {}]
  %s3 = inlined_call_operand.vmem [shape: f32[4,128], index: 3, kind: input, shape index: {}]
  %s4 = inlined_call_operand.vmem [shape: f32[1,128], index: 4, kind: input, shape index: {}]
  %s5 = inlined_call_operand.vmem [shape: f32[128,128], index: 5, kind: input, shape index: {}]
  %s6 = inlined_call_operand.vmem [shape: f32[1,128], index: 6, kind: input, shape index: {}]
  %s7 = inlined_call_operand.vmem [shape: f32[1,128], index: 7, kind: input, shape index: {}]
  %s8 = inlined_call_operand.<no memory space> [shape: f32[1], index: 8, kind: input, shape index: {}]
  %s9 = inlined_call_operand.hbm [shape: f32[1,128], index: 9, kind: output, shape index: {}]
  %s10 = sld [smem:[#allocation0]]
  $region46: #{tpu_custom_call.1} parent=0
    _
  %s12 = ssub.s32 1, %s10
  %s13 = scalar_select 0, %s12, %s10
  %14 = sst [smem:[#allocation2]] %s8
  $region1: #{tpu_custom_call.1} parent=0
    #allocation3 [shape = 'u8[512]{0}', space=vmem, size = 0x400, scoped, tag = 'output window, operand 0, single buffered']
    #allocation4 [shape = 's32[1]{0}', space=sflag, size = 0x4, scoped, tag = 'scoped memory for tpu_custom_call.1']
    %15 = vsyncpa [#allocation4], 0
    // Predicated region
    $region2: #{tpu_custom_call.1} parent=1 // pred_check
      _
    $region3: #{tpu_custom_call.1} parent=1 // pred_check_branch
      %17 = sbr.rel (0) target = $region5
    $region4: #{tpu_custom_call.1} parent=1 // pred_region
      _
    $region5: #{tpu_custom_call.1} parent=1 // pred_fallthru
      _
    // Predicated region
    $region6: #{tpu_custom_call.1} parent=1 // pred_check
      _
    $region7: #{tpu_custom_call.1} parent=1 // pred_check_branch
      %19 = sbr.rel (0) target = $region9
    $region8: #{tpu_custom_call.1} parent=1 // pred_region
      _
    $region9: #{tpu_custom_call.1} parent=1 // pred_fallthru
      _
    // Predicated region
    $region10: #{tpu_custom_call.1} parent=1 // pred_check
      _
    $region11: #{tpu_custom_call.1} parent=1 // pred_check_branch
      %21 = sbr.rel (0) target = $region13
    $region12: #{tpu_custom_call.1} parent=1 // pred_region
      _
    $region13: #{tpu_custom_call.1} parent=1 // pred_fallthru
      _
    // Predicated region
    $region14: #{tpu_custom_call.1} parent=1 // pred_check
      _
    $region15: #{tpu_custom_call.1} parent=1 // pred_check_branch
      %23 = sbr.rel (0) target = $region17
    $region16: #{tpu_custom_call.1} parent=1 // pred_region
      _
    $region17: #{tpu_custom_call.1} parent=1 // pred_fallthru
      _
    // Predicated region
    $region18: #{tpu_custom_call.1} parent=1 // pred_check
      _
    $region19: #{tpu_custom_call.1} parent=1 // pred_check_branch
      %25 = sbr.rel (0) target = $region21
    $region20: #{tpu_custom_call.1} parent=1 // pred_region
      _
    $region21: #{tpu_custom_call.1} parent=1 // pred_fallthru
      _
    // Predicated region
    $region22: #{tpu_custom_call.1} parent=1 // pred_check
      _
    $region23: #{tpu_custom_call.1} parent=1 // pred_check_branch
      %27 = sbr.rel (0) target = $region25
    $region24: #{tpu_custom_call.1} parent=1 // pred_region
      _
    $region25: #{tpu_custom_call.1} parent=1 // pred_fallthru
      _
    // Predicated region
    $region26: #{tpu_custom_call.1} parent=1 // pred_check
      _
    $region27: #{tpu_custom_call.1} parent=1 // pred_check_branch
      %29 = sbr.rel (0) target = $region29
    $region28: #{tpu_custom_call.1} parent=1 // pred_region
      _
    $region29: #{tpu_custom_call.1} parent=1 // pred_fallthru
      _
    // Predicated region
    $region30: #{tpu_custom_call.1} parent=1 // pred_check
      _
    $region31: #{tpu_custom_call.1} parent=1 // pred_check_branch
      %31 = sbr.rel (0) target = $region33
    $region32: #{tpu_custom_call.1} parent=1 // pred_region
      _
    $region33: #{tpu_custom_call.1} parent=1 // pred_fallthru
      _
    // Predicated region
    $region34: #{tpu_custom_call.1} parent=1 // pred_check
      _
    $region35: #{tpu_custom_call.1} parent=1 // pred_check_branch
      %33 = sbr.rel (0) target = $region37
    $region36: #{tpu_custom_call.1} parent=1 // pred_region
      _
    $region37: #{tpu_custom_call.1} parent=1 // pred_fallthru
      _
    %v34 = vld [vmem:[%s0] sm:$0xff]
    %v35 = vld [vmem:[%s0 + $0x8] sm:$0xff]
    %v36 = vld [vmem:[%s0 + $0x10] sm:$0xff]
    %v37 = vld [vmem:[%s0 + $0x18] sm:$0xff]
    %v38 = vld [vmem:[%s0 + $0x20] sm:$0xff]
    %v39 = vld [vmem:[%s0 + $0x28] sm:$0xff]
    %v40 = vld [vmem:[%s0 + $0x30] sm:$0xff]
    %v41 = vld [vmem:[%s0 + $0x38] sm:$0xff]
    %v42 = vld [vmem:[%s0 + $0x40] sm:$0xff]
    %v43 = vld [vmem:[%s0 + $0x48] sm:$0xff]
    %v44 = vld [vmem:[%s0 + $0x50] sm:$0xff]
    %v45 = vld [vmem:[%s0 + $0x58] sm:$0xff]
    %v46 = vld [vmem:[%s0 + $0x60] sm:$0xff]
    %v47 = vld [vmem:[%s0 + $0x68] sm:$0xff]
    %v48 = vld [vmem:[%s0 + $0x70] sm:$0xff]
    %v49 = vld [vmem:[%s0 + $0x78] sm:$0xff]
    %v50 = vld [vmem:[%s2] sm:$0xff]
    %v51 = vld [vmem:[%s2 + $0x8] sm:$0xff]
    %v52 = vld [vmem:[%s1] sm:$0xff]
    %v53 = vld [vmem:[%s1 + $0x8] sm:$0xff]
    %v54 = vld [vmem:[%s1 + $0x10] sm:$0xff]
    %v55 = vld [vmem:[%s1 + $0x18] sm:$0xff]
    %v56 = vld [vmem:[%s1 + $0x20] sm:$0xff]
    %v57 = vld [vmem:[%s1 + $0x28] sm:$0xff]
    %v58 = vld [vmem:[%s1 + $0x30] sm:$0xff]
    %v59 = vld [vmem:[%s1 + $0x38] sm:$0xff]
    %v60 = vld [vmem:[%s1 + $0x40] sm:$0xff]
    %v61 = vld [vmem:[%s1 + $0x48] sm:$0xff]
    %v62 = vld [vmem:[%s1 + $0x50] sm:$0xff]
    %v63 = vld [vmem:[%s1 + $0x58] sm:$0xff]
    %v64 = vld [vmem:[%s1 + $0x60] sm:$0xff]
    %v65 = vld [vmem:[%s1 + $0x68] sm:$0xff]
    %v66 = vld [vmem:[%s1 + $0x70] sm:$0xff]
    %v67 = vld [vmem:[%s1 + $0x78] sm:$0xff]
    %v68 = vld [vmem:[%s3] sm:$0xf]
    %vm69 = vcmask 31744
    %v71 = vsel %vm69, %v52, 0
    %v74 = vsel %vm69, %v53, 0
    %v77 = vsel %vm69, %v54, 0
    %v80 = vsel %vm69, %v55, 0
    %v83 = vsel %vm69, %v56, 0
    %v86 = vsel %vm69, %v57, 0
    %v89 = vsel %vm69, %v58, 0
    %v92 = vsel %vm69, %v59, 0
    %v95 = vsel %vm69, %v60, 0
    %v98 = vsel %vm69, %v61, 0
    %v101 = vsel %vm69, %v62, 0
    %v104 = vsel %vm69, %v63, 0
    %v107 = vsel %vm69, %v64, 0
    %v110 = vsel %vm69, %v65, 0
    %v113 = vsel %vm69, %v66, 0
    %v116 = vsel %vm69, %v67, 0
    %vm118 = vcmask 1043456
    %v120 = vsel %vm118, %v68, 0
    %122 = vmatprep.subr.mxu0 0.0
    %123 = vmatpush1.msra.mxu0 %v120
    %124 = vmatprep.subr.mxu0 0.0
    %125 = vmatpush1.msra.mxu0 0.0
    %126 = vmatprep.subr.mxu0 0.0
    %127 = vmatpush1.msra.mxu0 0.0
    %128 = vmatprep.subr.mxu0 0.0
    %129 = vmatpush1.msra.mxu0 0.0
    %130 = vmatprep.subr.mxu0 0.0
    %131 = vmatpush1.msra.mxu0 0.0
    %132 = vmatprep.subr.mxu0 0.0
    %133 = vmatpush1.msra.mxu0 0.0
    %134 = vmatprep.subr.mxu0 0.0
    %135 = vmatpush1.msra.mxu0 0.0
    %136 = vmatprep.subr.mxu0 0.0
    %137 = vmatpush1.msra.mxu0 0.0
    %138 = vmatprep.subr.mxu0 0.0
    %139 = vmatpush1.msra.mxu0 0.0
    %140 = vmatprep.subr.mxu0 0.0
    %141 = vmatpush1.msra.mxu0 0.0
    %142 = vmatprep.subr.mxu0 0.0
    %143 = vmatpush1.msra.mxu0 0.0
    %144 = vmatprep.subr.mxu0 0.0
    %145 = vmatpush1.msra.mxu0 0.0
    %146 = vmatprep.subr.mxu0 0.0
    %147 = vmatpush1.msra.mxu0 0.0
    %148 = vmatprep.subr.mxu0 0.0
    %149 = vmatpush1.msra.mxu0 0.0
    %150 = vmatprep.subr.mxu0 0.0
    %151 = vmatpush1.msra.mxu0 0.0
    %152 = vmatprep.subr.mxu0 0.0
    %153 = vmatpush1.msra.mxu0 0.0
    %154 = vmatprep.subr.mxu0 0.0
    %155 = vmatpush1.msra.mxu0 0.0
    %156 = vmatprep.subr.mxu0 0.0
    %157 = vmatpush1.msra.mxu0 0.0
    %158 = vmatprep.subr.mxu0 0.0
    %159 = vmatpush1.msra.mxu0 0.0
    %160 = vmatprep.subr.mxu0 0.0
    %161 = vmatpush1.msra.mxu0 0.0
    %162 = vmatprep.subr.mxu0 0.0
    %163 = vmatpush1.msra.mxu0 0.0
    %164 = vmatprep.subr.mxu0 0.0
    %165 = vmatpush1.msra.mxu0 0.0
    %166 = vmatprep.subr.mxu0 0.0
    %167 = vmatpush1.msra.mxu0 0.0
    %168 = vmatprep.subr.mxu0 0.0
    %169 = vmatpush1.msra.mxu0 0.0
    %170 = vmatprep.subr.mxu0 0.0
    %171 = vmatpush1.msra.mxu0 0.0
    %172 = vmatprep.subr.mxu0 0.0
    %173 = vmatpush1.msra.mxu0 0.0
    %174 = vmatprep.subr.mxu0 0.0
    %175 = vmatpush1.msra.mxu0 0.0
    %176 = vmatprep.subr.mxu0 0.0
    %177 = vmatpush1.msra.mxu0 0.0
    %178 = vmatprep.subr.mxu0 0.0
    %179 = vmatpush1.msra.mxu0 0.0
    %180 = vmatprep.subr.mxu0 0.0
    %181 = vmatpush1.msra.mxu0 0.0
    %182 = vmatprep.subr.mxu0 0.0
    %183 = vmatpush1.msra.mxu0 0.0
    %184 = vmatprep.subr.mxu0 0.0
    %185 = vmatpush1.msra.mxu0 0.0
    %186 = vmatprep.mubr.f32.mxu0 0.0
    %187 = vmatmul.mubr.f32.gmra.mrb[0].mxu0 %v71
    %v188 = vpop.f32.mrb[0].mxu0
    %v189 = vadd.f32 0.0, %v188
    %v190 = vpop.f32.mrb[0].mxu0
    %191 = vmatprep.mubr.f32.mxu0 0.0
    %192 = vmatmul.mubr.f32.gmra.mrb[0].mxu0 %v74
    %v193 = vpop.f32.mrb[0].mxu0
    %v194 = vadd.f32 0.0, %v193
    %v195 = vpop.f32.mrb[0].mxu0
    %196 = vmatprep.mubr.f32.mxu0 0.0
    %197 = vmatmul.mubr.f32.gmra.mrb[0].mxu0 %v77
    %v198 = vpop.f32.mrb[0].mxu0
    %v199 = vadd.f32 0.0, %v198
    %v200 = vpop.f32.mrb[0].mxu0
    %201 = vmatprep.mubr.f32.mxu0 0.0
    %202 = vmatmul.mubr.f32.gmra.mrb[0].mxu0 %v80
    %v203 = vpop.f32.mrb[0].mxu0
    %v204 = vadd.f32 0.0, %v203
    %v205 = vpop.f32.mrb[0].mxu0
    %206 = vmatprep.mubr.f32.mxu0 0.0
    %207 = vmatmul.mubr.f32.gmra.mrb[0].mxu0 %v83
    %v208 = vpop.f32.mrb[0].mxu0
    %v209 = vadd.f32 0.0, %v208
    %v210 = vpop.f32.mrb[0].mxu0
    %211 = vmatprep.mubr.f32.mxu0 0.0
    %212 = vmatmul.mubr.f32.gmra.mrb[0].mxu0 %v86
    %v213 = vpop.f32.mrb[0].mxu0
    %v214 = vadd.f32 0.0, %v213
    %v215 = vpop.f32.mrb[0].mxu0
    %216 = vmatprep.mubr.f32.mxu0 0.0
    %217 = vmatmul.mubr.f32.gmra.mrb[0].mxu0 %v89
    %v218 = vpop.f32.mrb[0].mxu0
    %v219 = vadd.f32 0.0, %v218
    %v220 = vpop.f32.mrb[0].mxu0
    %221 = vmatprep.mubr.f32.mxu0 0.0
    %222 = vmatmul.mubr.f32.gmra.mrb[0].mxu0 %v92
    %v223 = vpop.f32.mrb[0].mxu0
    %v224 = vadd.f32 0.0, %v223
    %v225 = vpop.f32.mrb[0].mxu0
    %226 = vmatprep.mubr.f32.mxu0 0.0
    %227 = vmatmul.mubr.f32.gmra.mrb[0].mxu0 %v95
    %v228 = vpop.f32.mrb[0].mxu0
    %v229 = vadd.f32 0.0, %v228
    %v230 = vpop.f32.mrb[0].mxu0
    %231 = vmatprep.mubr.f32.mxu0 0.0
    %232 = vmatmul.mubr.f32.gmra.mrb[0].mxu0 %v98
    %v233 = vpop.f32.mrb[0].mxu0
    %v234 = vadd.f32 0.0, %v233
    %v235 = vpop.f32.mrb[0].mxu0
    %236 = vmatprep.mubr.f32.mxu0 0.0
    %237 = vmatmul.mubr.f32.gmra.mrb[0].mxu0 %v101
    %v238 = vpop.f32.mrb[0].mxu0
    %v239 = vadd.f32 0.0, %v238
    %v240 = vpop.f32.mrb[0].mxu0
    %241 = vmatprep.mubr.f32.mxu0 0.0
    %242 = vmatmul.mubr.f32.gmra.mrb[0].mxu0 %v104
    %v243 = vpop.f32.mrb[0].mxu0
    %v244 = vadd.f32 0.0, %v243
    %v245 = vpop.f32.mrb[0].mxu0
    %246 = vmatprep.mubr.f32.mxu0 0.0
    %247 = vmatmul.mubr.f32.gmra.mrb[0].mxu0 %v107
    %v248 = vpop.f32.mrb[0].mxu0
    %v249 = vadd.f32 0.0, %v248
    %v250 = vpop.f32.mrb[0].mxu0
    %251 = vmatprep.mubr.f32.mxu0 0.0
    %252 = vmatmul.mubr.f32.gmra.mrb[0].mxu0 %v110
    %v253 = vpop.f32.mrb[0].mxu0
    %v254 = vadd.f32 0.0, %v253
    %v255 = vpop.f32.mrb[0].mxu0
    %256 = vmatprep.mubr.f32.mxu0 0.0
    %257 = vmatmul.mubr.f32.gmra.mrb[0].mxu0 %v113
    %v258 = vpop.f32.mrb[0].mxu0
    %v259 = vadd.f32 0.0, %v258
    %v260 = vpop.f32.mrb[0].mxu0
    %261 = vmatprep.mubr.f32.mxu0 0.0
    %262 = vmatmul.mubr.f32.gmra.mrb[0].mxu0 %v116
    %v263 = vpop.f32.mrb[0].mxu0
    %v264 = vadd.f32 0.0, %v263
    %v265 = vpop.f32.mrb[0].mxu0
    %266 = vdwg.mxu0
    %vm267 = vcmask 130048
    %v269 = vsel %vm267, %v34, 0
    %v272 = vsel %vm267, %v35, 0
    %v275 = vsel %vm267, %v36, 0
    %v278 = vsel %vm267, %v37, 0
    %v281 = vsel %vm267, %v38, 0
    %v284 = vsel %vm267, %v39, 0
    %v287 = vsel %vm267, %v40, 0
    %v290 = vsel %vm267, %v41, 0
    %v293 = vsel %vm267, %v42, 0
    %v296 = vsel %vm267, %v43, 0
    %v299 = vsel %vm267, %v44, 0
    %v302 = vsel %vm267, %v45, 0
    %v305 = vsel %vm267, %v46, 0
    %v308 = vsel %vm267, %v47, 0
    %v311 = vsel %vm267, %v48, 0
    %v314 = vsel %vm267, %v49, 0
    %316 = vmatprep.subr.mxu0 0.0
    %317 = vmatpush1.msra.mxu0 %v50
    %318 = vmatprep.subr.mxu0 0.0
    %319 = vmatpush1.msra.mxu0 %v51
    %320 = vmatprep.subr.mxu0 0.0
    %321 = vmatpush1.msra.mxu0 0.0
    %322 = vmatprep.subr.mxu0 0.0
    %323 = vmatpush1.msra.mxu0 0.0
    %324 = vmatprep.subr.mxu0 0.0
    %325 = vmatpush1.msra.mxu0 0.0
    %326 = vmatprep.subr.mxu0 0.0
    %327 = vmatpush1.msra.mxu0 0.0
    %328 = vmatprep.subr.mxu0 0.0
    %329 = vmatpush1.msra.mxu0 0.0
    %330 = vmatprep.subr.mxu0 0.0
    %331 = vmatpush1.msra.mxu0 0.0
    %332 = vmatprep.subr.mxu0 0.0
    %333 = vmatpush1.msra.mxu0 0.0
    %334 = vmatprep.subr.mxu0 0.0
    %335 = vmatpush1.msra.mxu0 0.0
    %336 = vmatprep.subr.mxu0 0.0
    %337 = vmatpush1.msra.mxu0 0.0
    %338 = vmatprep.subr.mxu0 0.0
    %339 = vmatpush1.msra.mxu0 0.0
    %340 = vmatprep.subr.mxu0 0.0
    %341 = vmatpush1.msra.mxu0 0.0
    %342 = vmatprep.subr.mxu0 0.0
    %343 = vmatpush1.msra.mxu0 0.0
    %344 = vmatprep.subr.mxu0 0.0
    %345 = vmatpush1.msra.mxu0 0.0
    %346 = vmatprep.subr.mxu0 0.0
    %347 = vmatpush1.msra.mxu0 0.0
    %348 = vmatprep.subr.mxu0 0.0
    %349 = vmatpush1.msra.mxu0 0.0
    %350 = vmatprep.subr.mxu0 0.0
    %351 = vmatpush1.msra.mxu0 0.0
    %352 = vmatprep.subr.mxu0 0.0
    %353 = vmatpush1.msra.mxu0 0.0
    %354 = vmatprep.subr.mxu0 0.0
    %355 = vmatpush1.msra.mxu0 0.0
    %356 = vmatprep.subr.mxu0 0.0
    %357 = vmatpush1.msra.mxu0 0.0
    %358 = vmatprep.subr.mxu0 0.0
    %359 = vmatpush1.msra.mxu0 0.0
    %360 = vmatprep.subr.mxu0 0.0
    %361 = vmatpush1.msra.mxu0 0.0
    %362 = vmatprep.subr.mxu0 0.0
    %363 = vmatpush1.msra.mxu0 0.0
    %364 = vmatprep.subr.mxu0 0.0
    %365 = vmatpush1.msra.mxu0 0.0
    %366 = vmatprep.subr.mxu0 0.0
    %367 = vmatpush1.msra.mxu0 0.0
    %368 = vmatprep.subr.mxu0 0.0
    %369 = vmatpush1.msra.mxu0 0.0
    %370 = vmatprep.subr.mxu0 0.0
    %371 = vmatpush1.msra.mxu0 0.0
    %372 = vmatprep.subr.mxu0 0.0
    %373 = vmatpush1.msra.mxu0 0.0
    %374 = vmatprep.subr.mxu0 0.0
    %375 = vmatpush1.msra.mxu0 0.0
    %376 = vmatprep.subr.mxu0 0.0
    %377 = vmatpush1.msra.mxu0 0.0
    %378 = vmatprep.subr.mxu0 0.0
    %379 = vmatpush1.msra.mxu0 0.0
    %380 = vmatprep.mubr.f32.mxu0 0.0
    %381 = vmatmul.mubr.f32.gmra.mrb[0].mxu0 %v269
    %v382 = vpop.f32.mrb[0].mxu0
    %v383 = vadd.f32 %v189, %v382
    %v384 = vpop.f32.mrb[0].mxu0
    %385 = vmatprep.mubr.f32.mxu0 0.0
    %386 = vmatmul.mubr.f32.gmra.mrb[0].mxu0 %v272
    %v387 = vpop.f32.mrb[0].mxu0
    %v388 = vadd.f32 %v194, %v387
    %v389 = vpop.f32.mrb[0].mxu0
    %390 = vmatprep.mubr.f32.mxu0 0.0
    %391 = vmatmul.mubr.f32.gmra.mrb[0].mxu0 %v275
    %v392 = vpop.f32.mrb[0].mxu0
    %v393 = vadd.f32 %v199, %v392
    %v394 = vpop.f32.mrb[0].mxu0
    %395 = vmatprep.mubr.f32.mxu0 0.0
    %396 = vmatmul.mubr.f32.gmra.mrb[0].mxu0 %v278
    %v397 = vpop.f32.mrb[0].mxu0
    %v398 = vadd.f32 %v204, %v397
    %v399 = vpop.f32.mrb[0].mxu0
    %400 = vmatprep.mubr.f32.mxu0 0.0
    %401 = vmatmul.mubr.f32.gmra.mrb[0].mxu0 %v281
    %v402 = vpop.f32.mrb[0].mxu0
    %v403 = vadd.f32 %v209, %v402
    %v404 = vpop.f32.mrb[0].mxu0
    %405 = vmatprep.mubr.f32.mxu0 0.0
    %406 = vmatmul.mubr.f32.gmra.mrb[0].mxu0 %v284
    %v407 = vpop.f32.mrb[0].mxu0
    %v408 = vadd.f32 %v214, %v407
    %v409 = vpop.f32.mrb[0].mxu0
    %410 = vmatprep.mubr.f32.mxu0 0.0
    %411 = vmatmul.mubr.f32.gmra.mrb[0].mxu0 %v287
    %v412 = vpop.f32.mrb[0].mxu0
    %v413 = vadd.f32 %v219, %v412
    %v414 = vpop.f32.mrb[0].mxu0
    %415 = vmatprep.mubr.f32.mxu0 0.0
    %416 = vmatmul.mubr.f32.gmra.mrb[0].mxu0 %v290
    %v417 = vpop.f32.mrb[0].mxu0
    %v418 = vadd.f32 %v224, %v417
    %v419 = vpop.f32.mrb[0].mxu0
    %420 = vmatprep.mubr.f32.mxu0 0.0
    %421 = vmatmul.mubr.f32.gmra.mrb[0].mxu0 %v293
    %v422 = vpop.f32.mrb[0].mxu0
    %v423 = vadd.f32 %v229, %v422
    %v424 = vpop.f32.mrb[0].mxu0
    %425 = vmatprep.mubr.f32.mxu0 0.0
    %426 = vmatmul.mubr.f32.gmra.mrb[0].mxu0 %v296
    %v427 = vpop.f32.mrb[0].mxu0
    %v428 = vadd.f32 %v234, %v427
    %v429 = vpop.f32.mrb[0].mxu0
    %430 = vmatprep.mubr.f32.mxu0 0.0
    %431 = vmatmul.mubr.f32.gmra.mrb[0].mxu0 %v299
    %v432 = vpop.f32.mrb[0].mxu0
    %v433 = vadd.f32 %v239, %v432
    %v434 = vpop.f32.mrb[0].mxu0
    %435 = vmatprep.mubr.f32.mxu0 0.0
    %436 = vmatmul.mubr.f32.gmra.mrb[0].mxu0 %v302
    %v437 = vpop.f32.mrb[0].mxu0
    %v438 = vadd.f32 %v244, %v437
    %v439 = vpop.f32.mrb[0].mxu0
    %440 = vmatprep.mubr.f32.mxu0 0.0
    %441 = vmatmul.mubr.f32.gmra.mrb[0].mxu0 %v305
    %v442 = vpop.f32.mrb[0].mxu0
    %v443 = vadd.f32 %v249, %v442
    %v444 = vpop.f32.mrb[0].mxu0
    %445 = vmatprep.mubr.f32.mxu0 0.0
    %446 = vmatmul.mubr.f32.gmra.mrb[0].mxu0 %v308
    %v447 = vpop.f32.mrb[0].mxu0
    %v448 = vadd.f32 %v254, %v447
    %v449 = vpop.f32.mrb[0].mxu0
    %450 = vmatprep.mubr.f32.mxu0 0.0
    %451 = vmatmul.mubr.f32.gmra.mrb[0].mxu0 %v311
    %v452 = vpop.f32.mrb[0].mxu0
    %v453 = vadd.f32 %v259, %v452
    %v454 = vpop.f32.mrb[0].mxu0
    %455 = vmatprep.mubr.f32.mxu0 0.0
    %456 = vmatmul.mubr.f32.gmra.mrb[0].mxu0 %v314
    %v457 = vpop.f32.mrb[0].mxu0
    %v458 = vadd.f32 %v264, %v457
    %v459 = vpop.f32.mrb[0].mxu0
    %460 = vdwg.mxu0
    %v461 = vld [vmem:[%s4] sm:$0x1]
    %v463 = vlaneseq
    %v464 = vshrl.u32 %v463, 7
    %v465 = vsub.s32 0, %v464
    %v466 = vrot.slane %v461, %v465
    %v468 = vadd.f32 %v383, %v466
    %v469 = vadd.f32 %v388, %v466
    %v470 = vadd.f32 %v393, %v466
    %v471 = vadd.f32 %v398, %v466
    %v472 = vadd.f32 %v403, %v466
    %v473 = vadd.f32 %v408, %v466
    %v474 = vadd.f32 %v413, %v466
    %v475 = vadd.f32 %v418, %v466
    %v476 = vadd.f32 %v423, %v466
    %v477 = vadd.f32 %v428, %v466
    %v478 = vadd.f32 %v433, %v466
    %v479 = vadd.f32 %v438, %v466
    %v480 = vadd.f32 %v443, %v466
    %v481 = vadd.f32 %v448, %v466
    %v482 = vadd.f32 %v453, %v466
    %v483 = vadd.f32 %v458, %v466
    %v484 = vmax.f32 %v468, 0.0
    %v485 = vmax.f32 %v469, 0.0
    %v486 = vmax.f32 %v470, 0.0
    %v487 = vmax.f32 %v471, 0.0
    %v488 = vmax.f32 %v472, 0.0
    %v489 = vmax.f32 %v473, 0.0
    %v490 = vmax.f32 %v474, 0.0
    %v491 = vmax.f32 %v475, 0.0
    %v492 = vmax.f32 %v476, 0.0
    %v493 = vmax.f32 %v477, 0.0
    %v494 = vmax.f32 %v478, 0.0
    %v495 = vmax.f32 %v479, 0.0
    %v496 = vmax.f32 %v480, 0.0
    %v497 = vmax.f32 %v481, 0.0
    %v498 = vmax.f32 %v482, 0.0
    %v499 = vmax.f32 %v483, 0.0
    %v500 = vld [vmem:[%s5] sm:$0xff]
    %v501 = vld [vmem:[%s5 + $0x8] sm:$0xff]
    %v502 = vld [vmem:[%s5 + $0x10] sm:$0xff]
    %v503 = vld [vmem:[%s5 + $0x18] sm:$0xff]
    %v504 = vld [vmem:[%s5 + $0x20] sm:$0xff]
    %v505 = vld [vmem:[%s5 + $0x28] sm:$0xff]
    %v506 = vld [vmem:[%s5 + $0x30] sm:$0xff]
    %v507 = vld [vmem:[%s5 + $0x38] sm:$0xff]
    %v508 = vld [vmem:[%s5 + $0x40] sm:$0xff]
    %v509 = vld [vmem:[%s5 + $0x48] sm:$0xff]
    %v510 = vld [vmem:[%s5 + $0x50] sm:$0xff]
    %v511 = vld [vmem:[%s5 + $0x58] sm:$0xff]
    %v512 = vld [vmem:[%s5 + $0x60] sm:$0xff]
    %v513 = vld [vmem:[%s5 + $0x68] sm:$0xff]
    %v514 = vld [vmem:[%s5 + $0x70] sm:$0xff]
    %v515 = vld [vmem:[%s5 + $0x78] sm:$0xff]
    %v516 = vld [vmem:[%s6] sm:$0x1]
    %v518 = vlaneseq
    %v519 = vshrl.u32 %v518, 7
    %v520 = vsub.s32 0, %v519
    %v521 = vrot.slane %v516, %v520
    %523 = vmatprep.subr.mxu0 0.0
    %524 = vmatpush1.msra.mxu0 %v500
    %525 = vmatprep.subr.mxu0 0.0
    %526 = vmatpush1.msra.mxu0 %v501
    %527 = vmatprep.subr.mxu0 0.0
    %528 = vmatpush1.msra.mxu0 %v502
    %529 = vmatprep.subr.mxu0 0.0
    %530 = vmatpush1.msra.mxu0 %v503
    %531 = vmatprep.subr.mxu0 0.0
    %532 = vmatpush1.msra.mxu0 %v504
    %533 = vmatprep.subr.mxu0 0.0
    %534 = vmatpush1.msra.mxu0 %v505
    %535 = vmatprep.subr.mxu0 0.0
    %536 = vmatpush1.msra.mxu0 %v506
    %537 = vmatprep.subr.mxu0 0.0
    %538 = vmatpush1.msra.mxu0 %v507
    %539 = vmatprep.subr.mxu0 0.0
    %540 = vmatpush1.msra.mxu0 %v508
    %541 = vmatprep.subr.mxu0 0.0
    %542 = vmatpush1.msra.mxu0 %v509
    %543 = vmatprep.subr.mxu0 0.0
    %544 = vmatpush1.msra.mxu0 %v510
    %545 = vmatprep.subr.mxu0 0.0
    %546 = vmatpush1.msra.mxu0 %v511
    %547 = vmatprep.subr.mxu0 0.0
    %548 = vmatpush1.msra.mxu0 %v512
    %549 = vmatprep.subr.mxu0 0.0
    %550 = vmatpush1.msra.mxu0 %v513
    %551 = vmatprep.subr.mxu0 0.0
    %552 = vmatpush1.msra.mxu0 %v514
    %553 = vmatprep.subr.mxu0 0.0
    %554 = vmatpush1.msra.mxu0 %v515
    %555 = vmatprep.subr.mxu0 0.0
    %556 = vmatpush1.msra.mxu0 0.0
    %557 = vmatprep.subr.mxu0 0.0
    %558 = vmatpush1.msra.mxu0 0.0
    %559 = vmatprep.subr.mxu0 0.0
    %560 = vmatpush1.msra.mxu0 0.0
    %561 = vmatprep.subr.mxu0 0.0
    %562 = vmatpush1.msra.mxu0 0.0
    %563 = vmatprep.subr.mxu0 0.0
    %564 = vmatpush1.msra.mxu0 0.0
    %565 = vmatprep.subr.mxu0 0.0
    %566 = vmatpush1.msra.mxu0 0.0
    %567 = vmatprep.subr.mxu0 0.0
    %568 = vmatpush1.msra.mxu0 0.0
    %569 = vmatprep.subr.mxu0 0.0
    %570 = vmatpush1.msra.mxu0 0.0
    %571 = vmatprep.subr.mxu0 0.0
    %572 = vmatpush1.msra.mxu0 0.0
    %573 = vmatprep.subr.mxu0 0.0
    %574 = vmatpush1.msra.mxu0 0.0
    %575 = vmatprep.subr.mxu0 0.0
    %576 = vmatpush1.msra.mxu0 0.0
    %577 = vmatprep.subr.mxu0 0.0
    %578 = vmatpush1.msra.mxu0 0.0
    %579 = vmatprep.subr.mxu0 0.0
    %580 = vmatpush1.msra.mxu0 0.0
    %581 = vmatprep.subr.mxu0 0.0
    %582 = vmatpush1.msra.mxu0 0.0
    %583 = vmatprep.subr.mxu0 0.0
    %584 = vmatpush1.msra.mxu0 0.0
    %585 = vmatprep.subr.mxu0 0.0
    %586 = vmatpush1.msra.mxu0 0.0
    %587 = vmatprep.mubr.f32.mxu0 0.0
    %588 = vmatmul.mubr.f32.gmra.mrb[0].mxu0 %v484
    %v589 = vpop.f32.mrb[0].mxu0
    %v590 = vadd.f32 %v521, %v589
    %v591 = vpop.f32.mrb[0].mxu0
    %592 = vmatprep.mubr.f32.mxu0 0.0
    %593 = vmatmul.mubr.f32.gmra.mrb[0].mxu0 %v485
    %v594 = vpop.f32.mrb[0].mxu0
    %v595 = vadd.f32 %v521, %v594
    %v596 = vpop.f32.mrb[0].mxu0
    %597 = vmatprep.mubr.f32.mxu0 0.0
    %598 = vmatmul.mubr.f32.gmra.mrb[0].mxu0 %v486
    %v599 = vpop.f32.mrb[0].mxu0
    %v600 = vadd.f32 %v521, %v599
    %v601 = vpop.f32.mrb[0].mxu0
    %602 = vmatprep.mubr.f32.mxu0 0.0
    %603 = vmatmul.mubr.f32.gmra.mrb[0].mxu0 %v487
    %v604 = vpop.f32.mrb[0].mxu0
    %v605 = vadd.f32 %v521, %v604
    %v606 = vpop.f32.mrb[0].mxu0
    %607 = vmatprep.mubr.f32.mxu0 0.0
    %608 = vmatmul.mubr.f32.gmra.mrb[0].mxu0 %v488
    %v609 = vpop.f32.mrb[0].mxu0
    %v610 = vadd.f32 %v521, %v609
    %v611 = vpop.f32.mrb[0].mxu0
    %612 = vmatprep.mubr.f32.mxu0 0.0
    %613 = vmatmul.mubr.f32.gmra.mrb[0].mxu0 %v489
    %v614 = vpop.f32.mrb[0].mxu0
    %v615 = vadd.f32 %v521, %v614
    %v616 = vpop.f32.mrb[0].mxu0
    %617 = vmatprep.mubr.f32.mxu0 0.0
    %618 = vmatmul.mubr.f32.gmra.mrb[0].mxu0 %v490
    %v619 = vpop.f32.mrb[0].mxu0
    %v620 = vadd.f32 %v521, %v619
    %v621 = vpop.f32.mrb[0].mxu0
    %622 = vmatprep.mubr.f32.mxu0 0.0
    %623 = vmatmul.mubr.f32.gmra.mrb[0].mxu0 %v491
    %v624 = vpop.f32.mrb[0].mxu0
    %v625 = vadd.f32 %v521, %v624
    %v626 = vpop.f32.mrb[0].mxu0
    %627 = vmatprep.mubr.f32.mxu0 0.0
    %628 = vmatmul.mubr.f32.gmra.mrb[0].mxu0 %v492
    %v629 = vpop.f32.mrb[0].mxu0
    %v630 = vadd.f32 %v521, %v629
    %v631 = vpop.f32.mrb[0].mxu0
    %632 = vmatprep.mubr.f32.mxu0 0.0
    %633 = vmatmul.mubr.f32.gmra.mrb[0].mxu0 %v493
    %v634 = vpop.f32.mrb[0].mxu0
    %v635 = vadd.f32 %v521, %v634
    %v636 = vpop.f32.mrb[0].mxu0
    %637 = vmatprep.mubr.f32.mxu0 0.0
    %638 = vmatmul.mubr.f32.gmra.mrb[0].mxu0 %v494
    %v639 = vpop.f32.mrb[0].mxu0
    %v640 = vadd.f32 %v521, %v639
    %v641 = vpop.f32.mrb[0].mxu0
    %642 = vmatprep.mubr.f32.mxu0 0.0
    %643 = vmatmul.mubr.f32.gmra.mrb[0].mxu0 %v495
    %v644 = vpop.f32.mrb[0].mxu0
    %v645 = vadd.f32 %v521, %v644
    %v646 = vpop.f32.mrb[0].mxu0
    %647 = vmatprep.mubr.f32.mxu0 0.0
    %648 = vmatmul.mubr.f32.gmra.mrb[0].mxu0 %v496
    %v649 = vpop.f32.mrb[0].mxu0
    %v650 = vadd.f32 %v521, %v649
    %v651 = vpop.f32.mrb[0].mxu0
    %652 = vmatprep.mubr.f32.mxu0 0.0
    %653 = vmatmul.mubr.f32.gmra.mrb[0].mxu0 %v497
    %v654 = vpop.f32.mrb[0].mxu0
    %v655 = vadd.f32 %v521, %v654
    %v656 = vpop.f32.mrb[0].mxu0
    %657 = vmatprep.mubr.f32.mxu0 0.0
    %658 = vmatmul.mubr.f32.gmra.mrb[0].mxu0 %v498
    %v659 = vpop.f32.mrb[0].mxu0
    %v660 = vadd.f32 %v521, %v659
    %v661 = vpop.f32.mrb[0].mxu0
    %662 = vmatprep.mubr.f32.mxu0 0.0
    %663 = vmatmul.mubr.f32.gmra.mrb[0].mxu0 %v499
    %v664 = vpop.f32.mrb[0].mxu0
    %v665 = vadd.f32 %v521, %v664
    %v666 = vpop.f32.mrb[0].mxu0
    %667 = vdwg.mxu0
    %v668 = vmax.f32 %v590, 0.0
    %v669 = vmax.f32 %v595, 0.0
    %v670 = vmax.f32 %v600, 0.0
    %v671 = vmax.f32 %v605, 0.0
    %v672 = vmax.f32 %v610, 0.0
    %v673 = vmax.f32 %v615, 0.0
    %v674 = vmax.f32 %v620, 0.0
    %v675 = vmax.f32 %v625, 0.0
    %v676 = vmax.f32 %v630, 0.0
    %v677 = vmax.f32 %v635, 0.0
    %v678 = vmax.f32 %v640, 0.0
    %v679 = vmax.f32 %v645, 0.0
    %v680 = vmax.f32 %v650, 0.0
    %v681 = vmax.f32 %v655, 0.0
    %v682 = vmax.f32 %v660, 0.0
    %v683 = vmax.f32 %v665, 0.0
    %v684 = vld [vmem:[%s7] sm:$0x1]
    %s685 = sld [smem:[#allocation2]]
    %v686 = vstv %s685
    %687 = vmatprep.subr.mxu0 0.0
    %688 = vmatpush1.xpose.msra.mxu0 %v668
    %689 = vmatprep.subr.mxu0 0.0
    %690 = vmatpush1.xpose.msra.mxu0 %v669
    %691 = vmatprep.subr.mxu0 0.0
    %692 = vmatpush1.xpose.msra.mxu0 %v670
    %693 = vmatprep.subr.mxu0 0.0
    %694 = vmatpush1.xpose.msra.mxu0 %v671
    %695 = vmatprep.subr.mxu0 0.0
    %696 = vmatpush1.xpose.msra.mxu0 %v672
    %697 = vmatprep.subr.mxu0 0.0
    %698 = vmatpush1.xpose.msra.mxu0 %v673
    %699 = vmatprep.subr.mxu0 0.0
    %700 = vmatpush1.xpose.msra.mxu0 %v674
    %701 = vmatprep.subr.mxu0 0.0
    %702 = vmatpush1.xpose.msra.mxu0 %v675
    %703 = vmatprep.subr.mxu0 0.0
    %704 = vmatpush1.xpose.msra.mxu0 %v676
    %705 = vmatprep.subr.mxu0 0.0
    %706 = vmatpush1.xpose.msra.mxu0 %v677
    %707 = vmatprep.subr.mxu0 0.0
    %708 = vmatpush1.xpose.msra.mxu0 %v678
    %709 = vmatprep.subr.mxu0 0.0
    %710 = vmatpush1.xpose.msra.mxu0 %v679
    %711 = vmatprep.subr.mxu0 0.0
    %712 = vmatpush1.xpose.msra.mxu0 %v680
    %713 = vmatprep.subr.mxu0 0.0
    %714 = vmatpush1.xpose.msra.mxu0 %v681
    %715 = vmatprep.subr.mxu0 0.0
    %716 = vmatpush1.xpose.msra.mxu0 %v682
    %717 = vmatprep.subr.mxu0 0.0
    %718 = vmatpush1.xpose.msra.mxu0 %v683
    %719 = vmatprep.subr.mxu0 0.0
    %720 = vmatpush1.xpose.msra.mxu0 0.0
    %721 = vmatprep.subr.mxu0 0.0
    %722 = vmatpush1.xpose.msra.mxu0 0.0
    %723 = vmatprep.subr.mxu0 0.0
    %724 = vmatpush1.xpose.msra.mxu0 0.0
    %725 = vmatprep.subr.mxu0 0.0
    %726 = vmatpush1.xpose.msra.mxu0 0.0
    %727 = vmatprep.subr.mxu0 0.0
    %728 = vmatpush1.xpose.msra.mxu0 0.0
    %729 = vmatprep.subr.mxu0 0.0
    %730 = vmatpush1.xpose.msra.mxu0 0.0
    %731 = vmatprep.subr.mxu0 0.0
    %732 = vmatpush1.xpose.msra.mxu0 0.0
    %733 = vmatprep.subr.mxu0 0.0
    %734 = vmatpush1.xpose.msra.mxu0 0.0
    %735 = vmatprep.subr.mxu0 0.0
    %736 = vmatpush1.xpose.msra.mxu0 0.0
    %737 = vmatprep.subr.mxu0 0.0
    %738 = vmatpush1.xpose.msra.mxu0 0.0
    %739 = vmatprep.subr.mxu0 0.0
    %740 = vmatpush1.xpose.msra.mxu0 0.0
    %741 = vmatprep.subr.mxu0 0.0
    %742 = vmatpush1.xpose.msra.mxu0 0.0
    %743 = vmatprep.subr.mxu0 0.0
    %744 = vmatpush1.xpose.msra.mxu0 0.0
    %745 = vmatprep.subr.mxu0 0.0
    %746 = vmatpush1.xpose.msra.mxu0 0.0
    %747 = vmatprep.subr.mxu0 0.0
    %748 = vmatpush1.xpose.msra.mxu0 0.0
    %749 = vmatprep.subr.mxu0 0.0
    %750 = vmatpush1.xpose.msra.mxu0 0.0
    %751 = vmatprep.mubr.f32.mxu0 0.0
    %752 = vmatmul.mubr.f32.gmra.mrb[0].mxu0 %v684
    %v753 = vpop.f32.mrb[0].mxu0
    %v754 = vadd.f32 %v686, %v753
    %v755 = vpop.f32.mrb[0].mxu0
    %756 = vdwg.mxu0
    %757 = vst [vmem:[#allocation3] sm:$0x1] %v754
    // Predicated region
    $region38: #{tpu_custom_call.1} parent=1 // pred_check
      _
    $region39: #{tpu_custom_call.1} parent=1 // pred_check_branch
      %759 = sbr.rel (0) target = $region41
    $region40: #{tpu_custom_call.1} parent=1 // pred_region
      %s761 = ssub.s32 16, 16
      %762 = vsyncadd [#allocation4], %s761
      %s764 = sshll.u32 [#allocation3], 4
      %s765 = int_to_ptr.vmem [resolvable:$true] %s764
      %767 = dma.vmem_to_hbm [thread:$0]  %s765, 16, %s9, [#allocation4]
    $region41: #{tpu_custom_call.1} parent=1 // pred_fallthru
      _
    // Predicated region
    $region42: #{tpu_custom_call.1} parent=1 // pred_check
      _
    $region43: #{tpu_custom_call.1} parent=1 // pred_check_branch
      %769 = sbr.rel (0) target = $region45
    $region44: #{tpu_custom_call.1} parent=1 // pred_region
      %770 = dma.done [#allocation4], 16
    $region45: #{tpu_custom_call.1} parent=1 // pred_fallthru
      _
    %771 = vsyncpa [#allocation4], 1

</llo_original>
